<compile_context>
chip_gen: v6e
topology: v6e:2x2x1
jax: 0.10.0
libtpu: 0.0.40
codegen_flags: <defaults>
</compile_context>

<pallas_src>
import functools

import jax
import jax.numpy as jnp
from jax import lax
from jax.experimental import pallas as pl
from jax.experimental.pallas import tpu as pltpu


def _t2v_kernel(tau_ref, w_ref, b_ref, out_ref, *, base_out_features):
    # Fused matmul on the MXU: packed_tau_tile @ blockdiag([w|w0]) + bias,
    # f32 accumulate.
    z = jnp.dot(tau_ref[...], w_ref[...], preferred_element_type=jnp.float32)
    z = z + b_ref[...].astype(jnp.float32)
    # sin on the first (out_features - 1) columns of every packed group; the
    # last column of each group stays linear.  iota/rem/where are cheap VPU
    # filler under the DMA shadow; sin goes to the EUP (separate slot).
    col = lax.broadcasted_iota(jnp.int32, z.shape, dimension=1)
    is_sin = lax.rem(col, base_out_features) < (base_out_features - 1)
    out_ref[...] = jnp.where(is_sin, jnp.sin(z), z).astype(out_ref.dtype)


def _default_pack_factor():
    """8-row lane pack on v6e/v7x (256-lane output), 4 on v5e (exactly 128)."""
    try:
        kind = jax.devices()[0].device_kind.lower()
    except Exception:
        return 4
    if "v5 lite" in kind or "v5e" in kind or "v5litepod" in kind:
        return 4
    return 8


def fuse_params(w, b, w0, b0, pack=1):
    """Fuse (w, b, w0, b0) into one lane-dense weight/bias pair.  Call once.

    With pack=P the weight is the PxP block-diagonal of [w | w0] so that a
    row-packed tau [N/P, P*in] @ W yields the row-packed output [N/P, P*out].
    """
    w_full = jnp.concatenate([w, w0], axis=1)                  # [in, out]
    b_full = jnp.concatenate([b, b0], axis=0)                  # [out]
    if pack > 1:
        w_full = jnp.kron(jnp.eye(pack, dtype=w_full.dtype), w_full)  # [P*in, P*out]
        b_full = jnp.tile(b_full, pack)                                # [P*out]
    return w_full, b_full.reshape(1, -1)


@functools.partial(jax.jit, static_argnames=("tile_rows",))
def trigonometric_activation_fused(tau, w_packed, b_packed, *, tile_rows=8192):
    """tau: [N, in]; w_packed: [P*in, P*out]; b_packed: [1, P*out] -> [N, out]."""
    n, in_features = tau.shape
    pack = w_packed.shape[0] // in_features
    base_out = w_packed.shape[1] // pack

    # Row-pack to a lane-dense layout (free, contiguous reshape).  The
    # convenience wrapper picks `pack` so it divides N; otherwise only the
    # last (< pack) rows are padded and sliced off again.
    n_pad = ((n + pack - 1) // pack) * pack
    if n_pad != n:
        tau = jnp.pad(tau, ((0, n_pad - n), (0, 0)))
    n_p = n_pad // pack
    tau_p = tau.reshape(n_p, pack * in_features)

    # Row tile (in packed rows): big enough to amortize per-step pipeline
    # overhead, capped so >= ~4 grid steps exist for the v7x megacore and so
    # double-buffered tiles stay inside even v5e's default scoped VMEM.
    tile_packed = max(8, tile_rows // pack)
    balanced = ((pl.cdiv(n_p, 4) + 7) // 8) * 8
    tn = min(tile_packed, balanced)
    if tn >= n_p:
        tn = n_p                            # one full-extent block (any size)
    else:
        tn = max(8, (tn // 8) * 8)          # interior blocks: multiple of 8 sublanes
    grid = pl.cdiv(n_p, tn)                 # partial trailing block handled by Pallas

    out_p = pl.pallas_call(
        functools.partial(_t2v_kernel, base_out_features=base_out),
        out_shape=jax.ShapeDtypeStruct((n_p, pack * base_out), tau.dtype),
        grid_spec=pltpu.PrefetchScalarGridSpec(
            num_scalar_prefetch=0,
            grid=(grid,),
            in_specs=[
                # Streaming lane-dense row tiles of packed tau (double-buffered).
                pl.BlockSpec((tn, pack * in_features), lambda i: (i, 0)),
                # Block-diagonal fused weight / bias: constant block index ->
                # stays VMEM-resident across all grid steps.
                pl.BlockSpec((pack * in_features, pack * base_out), lambda i: (0, 0)),
                pl.BlockSpec((1, pack * base_out), lambda i: (0, 0)),
            ],
            out_specs=pl.BlockSpec((tn, pack * base_out), lambda i: (i, 0)),
        ),
        compiler_params=pltpu.CompilerParams(
            # Row tiles are independent -> shard across the 2 TCs on v7x.
            dimension_semantics=("parallel",),
        ),
    )(tau_p, w_packed, b_packed)

    out = out_p.reshape(n_pad, base_out)    # free reshape back to [N, out]
    return out[:n] if n_pad != n else out


def trigonometric_activation(tau, w, b, w0, b0, *, tile_rows=8192):
    """Convenience wrapper matching the nn.Module parameterization (f = sin)."""
    n = tau.shape[0]
    pack = _default_pack_factor()
    # Use the largest pack factor dividing N so no pad / output-slice copy is
    # ever materialized (falls back to the lane-sparse path for odd N).
    while pack > 1 and n % pack != 0:
        pack //= 2
    w_packed, b_packed = fuse_params(w, b, w0, b0, pack=pack)
    return trigonometric_activation_fused(tau, w_packed, b_packed, tile_rows=tile_rows)


if __name__ == "__main__":
    # Small shapes consistent with the module: tau [batch, in_features].
    batch, in_features, out_features = 8, 16, 32

    key = jax.random.PRNGKey(0)
    k_tau, k_w, k_b, k_w0, k_b0 = jax.random.split(key, 5)

    tau = jax.random.normal(k_tau, (batch, in_features), dtype=jnp.float32)
    # Deterministic "randn" parameters (same shapes as the nn.Parameters).
    w = jax.random.normal(k_w, (in_features, out_features - 1), dtype=jnp.float32)
    b = jax.random.normal(k_b, (out_features - 1,), dtype=jnp.float32)
    w0 = jax.random.normal(k_w0, (in_features, 1), dtype=jnp.float32)
    b0 = jax.random.normal(k_b0, (1,), dtype=jnp.float32)

    def ref_t2v(t):
        return jnp.concatenate([jnp.sin(t @ w + b), t @ w0 + b0], axis=-1)

    # Small case (matches the module's forward at toy shapes).
    out = jax.block_until_ready(trigonometric_activation(tau, w, b, w0, b0))
    assert out.shape == (batch, out_features)
    assert jnp.allclose(out, ref_t2v(tau), atol=1e-5, rtol=1e-5)

    # Larger N (not a multiple of the row tile) -> exercises the cdiv grid and
    # partial trailing block; params fused once and reused across calls.
    w_packed, b_packed = fuse_params(w, b, w0, b0, pack=_default_pack_factor())
    tau_big = jax.random.normal(k_tau, (5000, in_features), dtype=jnp.float32)
    out_big = jax.block_until_ready(
        trigonometric_activation_fused(tau_big, w_packed, b_packed))
    assert out_big.shape == (5000, out_features)
    assert jnp.allclose(out_big, ref_t2v(tau_big), atol=1e-5, rtol=1e-5)

    # Odd N -> pack factor falls back to 1 (lane-sparse path, partial block).
    tau_odd = jax.random.normal(k_w, (1001, in_features), dtype=jnp.float32)
    out_odd = jax.block_until_ready(trigonometric_activation(tau_odd, w, b, w0, b0))
    assert out_odd.shape == (1001, out_features)
    assert jnp.allclose(out_odd, ref_t2v(tau_odd), atol=1e-5, rtol=1e-5)

    print("KERNEL_OK")
</pallas_src>

<mosaic_0001>
module attributes {stable_mosaic.version = 11 : i64} {
  func.func @_t2v_kernel(%arg0: i32, %arg1: memref<1x128xf32, #tpu.memory_space<vmem>>, %arg2: memref<128x256xf32, #tpu.memory_space<vmem>>, %arg3: memref<1x256xf32, #tpu.memory_space<vmem>>, %arg4: memref<1x256xf32, #tpu.memory_space<vmem>>) attributes {dimension_semantics = [#tpu.dimension_semantics<parallel>], iteration_bounds = array<i64: 1>, scalar_prefetch = 0 : i64, scratch_operands = 0 : i64, tpu.core_type = #tpu.core_type<tc>, window_params = [{transform_indices = @transform_0, window_bounds = array<i64: 1, 128>}, {pipeline_mode = #tpu.pipeline_mode<synchronous>, transform_indices = @transform_1, window_bounds = array<i64: 128, 256>}, {pipeline_mode = #tpu.pipeline_mode<synchronous>, transform_indices = @transform_2, window_bounds = array<i64: 1, 256>}, {transform_indices = @transform_3, window_bounds = array<i64: 1, 256>}]} {
    %c0 = arith.constant 0 : index
    %c0_0 = arith.constant 0 : index
    %0 = vector.load %arg1[%c0, %c0_0] : memref<1x128xf32, #tpu.memory_space<vmem>>, vector<1x128xf32>
    %c0_1 = arith.constant 0 : index
    %c0_2 = arith.constant 0 : index
    %1 = vector.load %arg2[%c0_1, %c0_2] : memref<128x256xf32, #tpu.memory_space<vmem>>, vector<128x256xf32>
    %cst = arith.constant dense<0.000000e+00> : vector<1x256xf32>
    %2 = tpu.matmul %0, %1, %cst {dimension_numbers = #tpu.dot_dimension_numbers<[1], [0], [0], [1], [0, 0, 1, 1], [], []>} : vector<1x128xf32>, vector<128x256xf32>, vector<1x256xf32> -> vector<1x256xf32>
    %c0_3 = arith.constant 0 : index
    %c0_4 = arith.constant 0 : index
    %3 = vector.load %arg3[%c0_3, %c0_4] : memref<1x256xf32, #tpu.memory_space<vmem>>, vector<1x256xf32>
    %4 = arith.addf %2, %3 : vector<1x256xf32>
    %5 = tpu.iota {dimensions = array<i32: 1>} : vector<1x256xi32>
    %c32_i32 = arith.constant 32 : i32
    %6 = vector.broadcast %c32_i32 : i32 to vector<1x256xi32>
    %7 = arith.remsi %5, %6 : vector<1x256xi32>
    %c31_i32 = arith.constant 31 : i32
    %8 = vector.broadcast %c31_i32 : i32 to vector<1x256xi32>
    %9 = arith.cmpi slt, %7, %8 : vector<1x256xi32>
    %10 = math.sin %4 : vector<1x256xf32>
    %11 = arith.select %9, %10, %4 : vector<1x256xi1>, vector<1x256xf32>
    %c0_5 = arith.constant 0 : index
    %c0_6 = arith.constant 0 : index
    %12 = vector.load %arg4[%c0_5, %c0_6] : memref<1x256xf32, #tpu.memory_space<vmem>>, vector<1x256xf32>
    tpu.vector_store %arg4[%c0_5, %c0_6], %11 {strides = array<i32>} : memref<1x256xf32, #tpu.memory_space<vmem>>, vector<1x256xf32>,
    return
  }
  func.func @transform_0(%arg0: i32) -> (i32, i32) {
    %c0_i32 = arith.constant 0 : i32
    %c0_i32_0 = arith.constant 0 : i32
    return %arg0, %c0_i32 : i32, i32
  }
  func.func @transform_1(%arg0: i32) -> (i32, i32) {
    %c0_i32 = arith.constant 0 : i32
    %c0_i32_0 = arith.constant 0 : i32
    %c0_i32_1 = arith.constant 0 : i32
    return %c0_i32, %c0_i32_0 : i32, i32
  }
  func.func @transform_2(%arg0: i32) -> (i32, i32) {
    %c0_i32 = arith.constant 0 : i32
    %c0_i32_0 = arith.constant 0 : i32
    %c0_i32_1 = arith.constant 0 : i32
    return %c0_i32, %c0_i32_0 : i32, i32
  }
  func.func @transform_3(%arg0: i32) -> (i32, i32) {
    %c0_i32 = arith.constant 0 : i32
    %c0_i32_0 = arith.constant 0 : i32
    return %arg0, %c0_i32 : i32, i32
  }
}

</mosaic_0001>

<llo_original>
// kernel: trigonometric_activation_fused.1
$region0: #{trigonometric_activation_fused.1}
  #allocation0 [shape = 'u32[]', space=smem, size = 0x4, offset = 0x4, fixed_abs, tag = 'smem constant byte address 0x4 - core index']
  #allocation1 [shape = 'u32[144,128]{1,0:T(1,128)}', space=vmem, size = 0x12000, scoped, tag = 'internal scratch']
  %s0 = inlined_call_operand.vmem [shape: f32[1,128], index: 0, kind: input, shape index: {}]
  %s1 = inlined_call_operand.hbm [shape: f32[128,256], index: 1, kind: input, shape index: {}]
  %s2 = inlined_call_operand.vmem [shape: f32[1,256], index: 2, kind: input, shape index: {}]
  %s3 = inlined_call_operand.vmem [shape: f32[1,256], index: 3, kind: output, shape index: {}]
  %s4 = sld [smem:[#allocation0]]
  $region26: #{trigonometric_activation_fused.1} parent=0
    _
  %s6 = ssub.s32 1, %s4
  %s7 = scalar_select 0, %s6, %s4
  $region1: #{trigonometric_activation_fused.1} parent=0
    #allocation2 [shape = 'u8[131072]{0}', space=vmem, size = 0x20000, scoped, tag = 'input window, operand 1, single buffered']
    #allocation3 [shape = 's32[1]{0}', space=sflag, size = 0x4, scoped, tag = 'scoped memory for trigonometric_activation_fused.1']
    %8 = vsyncpa [#allocation3], 0
    // Predicated region
    $region2: #{trigonometric_activation_fused.1} parent=1 // pred_check
      _
    $region3: #{trigonometric_activation_fused.1} parent=1 // pred_check_branch
      %10 = sbr.rel (0) target = $region5
    $region4: #{trigonometric_activation_fused.1} parent=1 // pred_region
      _
    $region5: #{trigonometric_activation_fused.1} parent=1 // pred_fallthru
      _
    // Predicated region
    $region6: #{trigonometric_activation_fused.1} parent=1 // pred_check
      _
    $region7: #{trigonometric_activation_fused.1} parent=1 // pred_check_branch
      %12 = sbr.rel (0) target = $region9
    $region8: #{trigonometric_activation_fused.1} parent=1 // pred_region
      %s14 = ssub.s32 4096, 4096
      %15 = vsyncadd [#allocation3], %s14
      %s16 = sshll.u32 [#allocation2], 4
      %s17 = int_to_ptr.vmem [resolvable:$true] %s16
      %22 = dma.hbm_to_vmem [thread:$0]  %s1, 4096, %s17, [#allocation3], 256, 256, 16
    $region9: #{trigonometric_activation_fused.1} parent=1 // pred_fallthru
      _
    // Predicated region
    $region10: #{trigonometric_activation_fused.1} parent=1 // pred_check
      _
    $region11: #{trigonometric_activation_fused.1} parent=1 // pred_check_branch
      %24 = sbr.rel (0) target = $region13
    $region12: #{trigonometric_activation_fused.1} parent=1 // pred_region
      _
    $region13: #{trigonometric_activation_fused.1} parent=1 // pred_fallthru
      _
    // Predicated region
    $region14: #{trigonometric_activation_fused.1} parent=1 // pred_check
      _
    $region15: #{trigonometric_activation_fused.1} parent=1 // pred_check_branch
      %26 = sbr.rel (0) target = $region17
    $region16: #{trigonometric_activation_fused.1} parent=1 // pred_region
      %27 = dma.done [#allocation3], 4096
    $region17: #{trigonometric_activation_fused.1} parent=1 // pred_fallthru
      _
    %v28 = vld [vmem:[%s0] sm:$0x1]
    %v29 = vld [vmem:[#allocation2] sm:$0xff]
    %v30 = vld [vmem:[#allocation2 + $0x8] sm:$0xff]
    %v31 = vld [vmem:[#allocation2 + $0x10] sm:$0xff]
    %v32 = vld [vmem:[#allocation2 + $0x18] sm:$0xff]
    %v33 = vld [vmem:[#allocation2 + $0x20] sm:$0xff]
    %v34 = vld [vmem:[#allocation2 + $0x28] sm:$0xff]
    %v35 = vld [vmem:[#allocation2 + $0x30] sm:$0xff]
    %v36 = vld [vmem:[#allocation2 + $0x38] sm:$0xff]
    %v37 = vld [vmem:[#allocation2 + $0x40] sm:$0xff]
    %v38 = vld [vmem:[#allocation2 + $0x48] sm:$0xff]
    %v39 = vld [vmem:[#allocation2 + $0x50] sm:$0xff]
    %v40 = vld [vmem:[#allocation2 + $0x58] sm:$0xff]
    %v41 = vld [vmem:[#allocation2 + $0x60] sm:$0xff]
    %v42 = vld [vmem:[#allocation2 + $0x68] sm:$0xff]
    %v43 = vld [vmem:[#allocation2 + $0x70] sm:$0xff]
    %v44 = vld [vmem:[#allocation2 + $0x78] sm:$0xff]
    %v45 = vld [vmem:[#allocation2 + $0x80] sm:$0xff]
    %v46 = vld [vmem:[#allocation2 + $0x88] sm:$0xff]
    %v47 = vld [vmem:[#allocation2 + $0x90] sm:$0xff]
    %v48 = vld [vmem:[#allocation2 + $0x98] sm:$0xff]
    %v49 = vld [vmem:[#allocation2 + $0xa0] sm:$0xff]
    %v50 = vld [vmem:[#allocation2 + $0xa8] sm:$0xff]
    %v51 = vld [vmem:[#allocation2 + $0xb0] sm:$0xff]
    %v52 = vld [vmem:[#allocation2 + $0xb8] sm:$0xff]
    %v53 = vld [vmem:[#allocation2 + $0xc0] sm:$0xff]
    %v54 = vld [vmem:[#allocation2 + $0xc8] sm:$0xff]
    %v55 = vld [vmem:[#allocation2 + $0xd0] sm:$0xff]
    %v56 = vld [vmem:[#allocation2 + $0xd8] sm:$0xff]
    %v57 = vld [vmem:[#allocation2 + $0xe0] sm:$0xff]
    %v58 = vld [vmem:[#allocation2 + $0xe8] sm:$0xff]
    %v59 = vld [vmem:[#allocation2 + $0xf0] sm:$0xff]
    %v60 = vld [vmem:[#allocation2 + $0xf8] sm:$0xff]
    %v61 = vld [vmem:[%s2] sm:$0x3]
    %v63 = vlaneseq
    %v64 = vshrl.u32 %v63, 7
    %v65 = vsub.s32 0, %v64
    %v66 = vrot.slane %v61, %v65
    %v67 = vlaneseq
    %v68 = vshrl.u32 %v67, 7
    %v69 = vsub.s32 1, %v68
    %v70 = vrot.slane %v61, %v69
    %73 = vmatprep.subr.mxu0 %v60
    %74 = vmatpush1.msra.mxu0 %v59
    %75 = vmatprep.subr.mxu0 %v58
    %76 = vmatpush1.msra.mxu0 %v57
    %77 = vmatprep.subr.mxu0 %v56
    %78 = vmatpush1.msra.mxu0 %v55
    %79 = vmatprep.subr.mxu0 %v54
    %80 = vmatpush1.msra.mxu0 %v53
    %81 = vmatprep.subr.mxu0 %v52
    %82 = vmatpush1.msra.mxu0 %v51
    %83 = vmatprep.subr.mxu0 %v50
    %84 = vmatpush1.msra.mxu0 %v49
    %85 = vmatprep.subr.mxu0 %v48
    %86 = vmatpush1.msra.mxu0 %v47
    %87 = vmatprep.subr.mxu0 %v46
    %88 = vmatpush1.msra.mxu0 %v45
    %89 = vmatprep.subr.mxu0 %v44
    %90 = vmatpush1.msra.mxu0 %v43
    %91 = vmatprep.subr.mxu0 %v42
    %92 = vmatpush1.msra.mxu0 %v41
    %93 = vmatprep.subr.mxu0 %v40
    %94 = vmatpush1.msra.mxu0 %v39
    %95 = vmatprep.subr.mxu0 %v38
    %96 = vmatpush1.msra.mxu0 %v37
    %97 = vmatprep.subr.mxu0 %v36
    %98 = vmatpush1.msra.mxu0 %v35
    %99 = vmatprep.subr.mxu0 %v34
    %100 = vmatpush1.msra.mxu0 %v33
    %101 = vmatprep.subr.mxu0 %v32
    %102 = vmatpush1.msra.mxu0 %v31
    %103 = vmatprep.subr.mxu0 %v30
    %104 = vmatpush1.msra.mxu0 %v29
    %105 = vmatprep.subr.mxu0 0.0
    %106 = vmatpush2.msra.mxu0 0.0
    %107 = vmatprep.subr.mxu0 0.0
    %108 = vmatpush2.msra.mxu0 0.0
    %109 = vmatprep.subr.mxu0 0.0
    %110 = vmatpush2.msra.mxu0 0.0
    %111 = vmatprep.subr.mxu0 0.0
    %112 = vmatpush2.msra.mxu0 0.0
    %113 = vmatprep.subr.mxu0 0.0
    %114 = vmatpush2.msra.mxu0 0.0
    %115 = vmatprep.subr.mxu0 0.0
    %116 = vmatpush2.msra.mxu0 0.0
    %117 = vmatprep.subr.mxu0 0.0
    %118 = vmatpush2.msra.mxu0 0.0
    %119 = vmatprep.subr.mxu0 0.0
    %120 = vmatpush2.msra.mxu0 0.0
    %121 = vmatprep.subr.mxu0 0.0
    %122 = vmatpush2.msra.mxu0 0.0
    %123 = vmatprep.subr.mxu0 0.0
    %124 = vmatpush2.msra.mxu0 0.0
    %125 = vmatprep.subr.mxu0 0.0
    %126 = vmatpush2.msra.mxu0 0.0
    %127 = vmatprep.subr.mxu0 0.0
    %128 = vmatpush2.msra.mxu0 0.0
    %129 = vmatprep.subr.mxu0 0.0
    %130 = vmatpush2.msra.mxu0 0.0
    %131 = vmatprep.subr.mxu0 0.0
    %132 = vmatpush2.msra.mxu0 0.0
    %133 = vmatprep.subr.mxu0 0.0
    %134 = vmatpush2.msra.mxu0 0.0
    %135 = vmatprep.subr.mxu0 0.0
    %136 = vmatpush2.msra.mxu0 0.0
    %137 = vmatprep.mubr.f32.mxu0 0.0
    %138 = vmatmul.mubr.f32.gmra.mxu0 %v28
    %v139 = vpop.f32.mrf.mxu0
    %v140 = vadd.f32 %v66, %v139
    %v141 = vpop.f32.mrf.mxu0
    %v142 = vadd.f32 %v70, %v141
    %143 = vdwg.mxu0
    %v144 = vlaneseq
    %v145 = vand.u32 %v144, 127
    %v146 = vadd.s32 %v145, 128
    %vm147 = vcmp.lt.s32.totalorder %v145, 0
    %v148 = vsub.s32 0, %v145
    %v149 = vsel %vm147, %v148, %v145
    %v150 = vshrl.u32 %v149, 5
    %v151 = vand.u32 %v149, 31
    %v152 = vsub.s32 0, %v151
    %v153 = vsel %vm147, %v152, %v151
    %vm154 = vcmp.lt.s32.totalorder %v146, 0
    %v155 = vsub.s32 0, %v146
    %v156 = vsel %vm154, %v155, %v146
    %v157 = vshrl.u32 %v156, 5
    %v158 = vand.u32 %v156, 31
    %v159 = vsub.s32 0, %v158
    %v160 = vsel %vm154, %v159, %v158
    %vm161 = vcmp.lt.s32.totalorder %v153, 31
    %vm162 = vcmp.lt.s32.totalorder %v160, 31
    %v163 = vand.u32 2147483647, %v140
    %vm164 = vcmp.le.f32.partialorder %v163, 0.7853982
    %vm165 = vcmp.lt.s32.totalorder %v140, 0
    %v166 = vand.u32 %v140, 2139095040
    %v167 = vshrl.u32 %v166, 23
    %v168 = vsub.s32 %v167, 127
    %v169 = vand.u32 2147483647, %v140
    %v170 = vand.u32 %v169, 8388607
    %v171 = vor.u32 %v170, 8388608
    %v172 = vsub.s32 0, %v171
    %v173 = vadd.s32 %v168, 1
    %vm174 = vcmp.gt.s32.totalorder %v173, 0
    %v175 = vsel %vm174, %v173, 0
    %v176 = vshrl.u32 %v175, 5
    %v177 = vand.u32 %v175, 31
    %v178 = vsub.s32 32, %v177
    %v179 = vshrl.u32 683565275, %v178
    %v180 = vshll.u32 683565275, %v177
    %v181 = vshrl.u32 2475754826, %v178
    %v182 = vor.u32 %v180, %v181
    %v183 = vshll.u32 2475754826, %v177
    %v184 = vshrl.u32 2131351028, %v178
    %v185 = vor.u32 %v183, %v184
    %v186 = vshll.u32 2131351028, %v177
    %v187 = vshrl.u32 2102212464, %v178
    %v188 = vor.u32 %v186, %v187
    %v189 = vshll.u32 2102212464, %v177
    %v190 = vshrl.u32 920167782, %v178
    %v191 = vor.u32 %v189, %v190
    %v192 = vshll.u32 920167782, %v177
    %v193 = vshrl.u32 1326507024, %v178
    %v194 = vor.u32 %v192, %v193
    %vm195 = vcmp.lt.s32.totalorder %v176, 1
    %vm196 = vcmp.lt.s32.totalorder %v176, 2
    %vm197 = vcmp.lt.s32.totalorder %v176, 3
    %vm198 = vcmp.lt.s32.totalorder %v176, 4
    %v199 = vsel %vm195, %v179, %v182
    %v200 = vsel %vm198, %v188, 2102212464
    %v201 = vsel %vm197, %v185, %v200
    %v202 = vsel %vm196, %v199, %v201
    %v203 = vsel %vm195, %v182, %v185
    %v204 = vsel %vm198, %v191, 920167782
    %v205 = vsel %vm197, %v188, %v204
    %v206 = vsel %vm196, %v203, %v205
    %v207 = vsel %vm195, %v185, %v188
    %v208 = vsel %vm198, %v194, 1326507024
    %v209 = vsel %vm197, %v191, %v208
    %v210 = vsel %vm196, %v207, %v209
    %v211 = vshll.u32 %v171, 8
    %v212 = vmul.u32.u64.compose %v211, %v210
    %v213 = vextract.low.u32 %v212
    %v214 = vextract.high.u32 %v212
    %v215 = vmul.u32.u64.compose %v211, %v206
    %v216 = vextract.low.u32 %v215
    %v217 = vextract.high.u32 %v215
    %v218 = vmul.u32 %v211, %v202
    %v219 = vadd.s32 %v214, %v216
    %vm220 = vc.u32 %v214, %v216
    %v221 = vadd.s32 %v217, 1
    %v222 = vsel %vm220, %v221, %v217
    %v223 = vadd.s32 %v218, %v222
    %v224 = vadd.s32 %v223, 536870912
    %v225 = vshrl.u32 %v224, 30
    %v226 = vshll.u32 %v225, 30
    %v227 = vsub.s32 %v223, %v226
    %vm228 = vcmp.lt.s32.totalorder %v227, 0
    %v229 = vsub.s32 0, %v227
    %v230 = vsel %vm228, %v229, %v227
    %v231 = vclz %v230
    %v232 = vsub.s32 %v231, 2
    %vm233 = vcmp.gt.s32.totalorder 0, %v232
    %v234 = vsel %vm233, 0, %v232
    %v235 = vsub.s32 32, %v234
    %v236 = vshll.u32 %v227, %v234
    %v237 = vshrl.u32 %v219, %v235
    %v238 = vor.u32 %v236, %v237
    %v239 = vsub.s32 4294967266, %v234
    %v240 = vadd.s32 %v239, 127
    %v241 = vshll.u32 %v240, 23
    %v242 = vor.u32 4788187, %v241
    %v243 = vand.u32 2147483647, %v242
    %v245 = vcvt.s32.f32 %v238
    %v246 = vmul.f32 %v245, %v243
    %v247 = vxor.u32 %v246, 2147483648
    %v248 = vsel %vm165, %v247, %v246
    %v249 = vsub.s32 4, %v225
    %v250 = vsel %vm165, %v249, %v225
    %v251 = vsel %vm164, %v140, %v248
    %v252 = vsel %vm164, 0, %v250
    %v253 = vcosq.f32.pop %v251
    %v254 = vsinq.f32.pop %v251
    %vm255 = vweird.f32 %v140
    %v256 = vadd.s32 %v252, 3
    %v257 = vand.u32 %v256, 3
    %vm258 = vcmp.lt.s32.totalorder %v257, 2
    %vm259 = vcmp.eq.s32.totalorder %v257, 0
    %v260 = vxor.u32 %v254, 2147483648
    %v261 = vsel %vm259, %v253, %v260
    %vm262 = vcmp.eq.s32.totalorder %v257, 2
    %v263 = vxor.u32 %v253, 2147483648
    %v264 = vsel %vm262, %v263, %v254
    %v265 = vsel %vm258, %v261, %v264
    %v266 = vsel %vm255, nan, %v265
    %v267 = vand.u32 2147483647, %v142
    %vm268 = vcmp.le.f32.partialorder %v267, 0.7853982
    %vm269 = vcmp.lt.s32.totalorder %v142, 0
    %v270 = vand.u32 %v142, 2139095040
    %v271 = vshrl.u32 %v270, 23
    %v272 = vsub.s32 %v271, 127
    %v273 = vand.u32 2147483647, %v142
    %v274 = vand.u32 %v273, 8388607
    %v275 = vor.u32 %v274, 8388608
    %v276 = vsub.s32 0, %v275
    %v277 = vadd.s32 %v272, 1
    %vm278 = vcmp.gt.s32.totalorder %v277, 0
    %v279 = vsel %vm278, %v277, 0
    %v280 = vshrl.u32 %v279, 5
    %v281 = vand.u32 %v279, 31
    %v282 = vsub.s32 32, %v281
    %v283 = vshrl.u32 683565275, %v282
    %v284 = vshll.u32 683565275, %v281
    %v285 = vshrl.u32 2475754826, %v282
    %v286 = vor.u32 %v284, %v285
    %v287 = vshll.u32 2475754826, %v281
    %v288 = vshrl.u32 2131351028, %v282
    %v289 = vor.u32 %v287, %v288
    %v290 = vshll.u32 2131351028, %v281
    %v291 = vshrl.u32 2102212464, %v282
    %v292 = vor.u32 %v290, %v291
    %v293 = vshll.u32 2102212464, %v281
    %v294 = vshrl.u32 920167782, %v282
    %v295 = vor.u32 %v293, %v294
    %v296 = vshll.u32 920167782, %v281
    %v297 = vshrl.u32 1326507024, %v282
    %v298 = vor.u32 %v296, %v297
    %vm299 = vcmp.lt.s32.totalorder %v280, 1
    %vm300 = vcmp.lt.s32.totalorder %v280, 2
    %vm301 = vcmp.lt.s32.totalorder %v280, 3
    %vm302 = vcmp.lt.s32.totalorder %v280, 4
    %v303 = vsel %vm299, %v283, %v286
    %v304 = vsel %vm302, %v292, 2102212464
    %v305 = vsel %vm301, %v289, %v304
    %v306 = vsel %vm300, %v303, %v305
    %v307 = vsel %vm299, %v286, %v289
    %v308 = vsel %vm302, %v295, 920167782
    %v309 = vsel %vm301, %v292, %v308
    %v310 = vsel %vm300, %v307, %v309
    %v311 = vsel %vm299, %v289, %v292
    %v312 = vsel %vm302, %v298, 1326507024
    %v313 = vsel %vm301, %v295, %v312
    %v314 = vsel %vm300, %v311, %v313
    %v315 = vshll.u32 %v275, 8
    %v316 = vmul.u32.u64.compose %v315, %v314
    %v317 = vextract.low.u32 %v316
    %v318 = vextract.high.u32 %v316
    %v319 = vmul.u32.u64.compose %v315, %v310
    %v320 = vextract.low.u32 %v319
    %v321 = vextract.high.u32 %v319
    %v322 = vmul.u32 %v315, %v306
    %v323 = vadd.s32 %v318, %v320
    %vm324 = vc.u32 %v318, %v320
    %v325 = vadd.s32 %v321, 1
    %v326 = vsel %vm324, %v325, %v321
    %v327 = vadd.s32 %v322, %v326
    %v328 = vadd.s32 %v327, 536870912
    %v329 = vshrl.u32 %v328, 30
    %v330 = vshll.u32 %v329, 30
    %v331 = vsub.s32 %v327, %v330
    %vm332 = vcmp.lt.s32.totalorder %v331, 0
    %v333 = vsub.s32 0, %v331
    %v334 = vsel %vm332, %v333, %v331
    %v335 = vclz %v334
    %v336 = vsub.s32 %v335, 2
    %vm337 = vcmp.gt.s32.totalorder 0, %v336
    %v338 = vsel %vm337, 0, %v336
    %v339 = vsub.s32 32, %v338
    %v340 = vshll.u32 %v331, %v338
    %v341 = vshrl.u32 %v323, %v339
    %v342 = vor.u32 %v340, %v341
    %v343 = vsub.s32 4294967266, %v338
    %v344 = vadd.s32 %v343, 127
    %v345 = vshll.u32 %v344, 23
    %v346 = vor.u32 4788187, %v345
    %v347 = vand.u32 2147483647, %v346
    %v349 = vcvt.s32.f32 %v342
    %v350 = vmul.f32 %v349, %v347
    %v351 = vxor.u32 %v350, 2147483648
    %v352 = vsel %vm269, %v351, %v350
    %v353 = vsub.s32 4, %v329
    %v354 = vsel %vm269, %v353, %v329
    %v355 = vsel %vm268, %v142, %v352
    %v356 = vsel %vm268, 0, %v354
    %v357 = vcosq.f32.pop %v355
    %v358 = vsinq.f32.pop %v355
    %vm359 = vweird.f32 %v142
    %v360 = vadd.s32 %v356, 3
    %v361 = vand.u32 %v360, 3
    %vm362 = vcmp.lt.s32.totalorder %v361, 2
    %vm363 = vcmp.eq.s32.totalorder %v361, 0
    %v364 = vxor.u32 %v358, 2147483648
    %v365 = vsel %vm363, %v357, %v364
    %vm366 = vcmp.eq.s32.totalorder %v361, 2
    %v367 = vxor.u32 %v357, 2147483648
    %v368 = vsel %vm366, %v367, %v358
    %v369 = vsel %vm362, %v365, %v368
    %v370 = vsel %vm359, nan, %v369
    %v371 = vsel %vm161, %v266, %v140
    %v372 = vsel %vm162, %v370, %v142
    %v375 = vcombine.low %v371, %v372
    %v377 = vunpack.c.l.s4 1966171168
    %v378 = vunpack.c.0.s8 %v377
    %v379 = vlaneseq
    %v380 = vshrl.u32 %v379, 7
    %v381 = vsub.s32 %v378, %v380
    %v382 = vrot.slane %v375, %v381
    %v384 = vunpack.c.l.s4 1966171168
    %v385 = vunpack.c.0.s8 %v384
    %v386 = vlaneseq
    %v387 = vshrl.u32 %v386, 7
    %v388 = vsub.s32 %v385, %v387
    %v389 = vrot.slane %v382, %v388
    %v391 = vlaneseq
    %vm392 = vcmp.ge.s32.totalorder %v391, 0
    %vm393 = vcmp.lt.s32.totalorder %v391, 256
    %vm394 = vmand %vm392, %vm393
    %395 = vst.msk [vmem:[%s3] sm:$0x3] %vm394, %v389
    // Predicated region
    $region18: #{trigonometric_activation_fused.1} parent=1 // pred_check
      _
    $region19: #{trigonometric_activation_fused.1} parent=1 // pred_check_branch
      %397 = sbr.rel (0) target = $region21
    $region20: #{trigonometric_activation_fused.1} parent=1 // pred_region
      _
    $region21: #{trigonometric_activation_fused.1} parent=1 // pred_fallthru
      _
    // Predicated region
    $region22: #{trigonometric_activation_fused.1} parent=1 // pred_check
      _
    $region23: #{trigonometric_activation_fused.1} parent=1 // pred_check_branch
      %399 = sbr.rel (0) target = $region25
    $region24: #{trigonometric_activation_fused.1} parent=1 // pred_region
      _
    $region25: #{trigonometric_activation_fused.1} parent=1 // pred_fallthru
      _
    %400 = vsyncpa [#allocation3], 1

</llo_original>
